<compile_context>
chip_gen: v5e
topology: v5e:2x2
jax: 0.10.0
libtpu: 0.0.40
codegen_flags: <defaults>
</compile_context>

<pallas_src>
import functools

import jax
import jax.numpy as jnp
from jax.experimental import pallas as pl
from jax.experimental.pallas import tpu as pltpu


def _grouped_maxpool_kernel(x_ref, o_ref):
    # x_ref block: (Bt, G, kernel_size, C); o_ref block: (Bt, G, C).
    # Reduction over the window axis lowers to (kernel_size - 1) vmax ops on
    # VMEM-resident data; the kernel is purely HBM-bandwidth bound.
    o_ref[...] = jnp.max(x_ref[...], axis=2)


def grouped_max_pool(features: jax.Array, kernel_size: int,
                     *, target_block_bytes: int = 2 << 20) -> jax.Array:
    """features: (B, N, C). Returns the same result as the PyTorch module."""
    B, N, C = features.shape
    out_len = N // kernel_size  # MaxPool1d default stride == kernel_size
    assert out_len >= 1, "kernel_size larger than number of points"

    # MaxPool1d(stride=k) drops the remainder -> slice as glue.
    feats = features[:, : out_len * kernel_size, :]
    # Free metadata reshape in HBM; grouping handled by the BlockSpec below.
    feats = feats.reshape(B, out_len, kernel_size, C)

    itemsize = jnp.dtype(features.dtype).itemsize
    per_group_bytes = kernel_size * C * itemsize

    if B * out_len * per_group_bytes <= target_block_bytes:
        # Tiny problem: one grid step, whole array in a single block.
        bt, g = B, out_len
    else:
        bt = 1
        g = max(1, target_block_bytes // per_group_bytes)
        if g >= out_len:
            g = out_len
        else:
            # Output block (bt, g, C): g must be a multiple of 8 (sublane rule)
            # when it does not cover the full out_len extent.
            g = max(8, (g // 8) * 8)

    grid = (pl.cdiv(B, bt), pl.cdiv(out_len, g))

    in_bytes = B * out_len * kernel_size * C * itemsize
    out_bytes = B * out_len * C * itemsize
    cost = pl.CostEstimate(
        flops=B * out_len * kernel_size * C,  # comparisons
        transcendentals=0,
        bytes_accessed=in_bytes + out_bytes,
    )

    pooled = pl.pallas_call(
        _grouped_maxpool_kernel,
        out_shape=jax.ShapeDtypeStruct((B, out_len, C), features.dtype),
        grid_spec=pltpu.PrefetchScalarGridSpec(
            num_scalar_prefetch=0,
            grid=grid,
            in_specs=[
                pl.BlockSpec((bt, g, kernel_size, C),
                             lambda b, j: (b, j, 0, 0)),
            ],
            out_specs=pl.BlockSpec((bt, g, C), lambda b, j: (b, j, 0)),
        ),
        compiler_params=pltpu.CompilerParams(
            dimension_semantics=("parallel", "parallel"),
        ),
        cost_estimate=cost,
    )(feats)

    # Match the PyTorch module's output layout.
    if out_len == 1:
        # (B, 1, C) -> (B, C): free reshape (no relayout), matches
        # transpose(1,2) + squeeze(-1).
        return pooled.reshape(B, C)
    # TODO(synk): for out_len > 1 this transpose is a separate XLA relayout
    # pass; drop it if the consumer can take (B, out_len, C) channels-last.
    return jnp.transpose(pooled, (0, 2, 1))


def _reference(features: jax.Array, kernel_size: int) -> jax.Array:
    B, N, C = features.shape
    out_len = N // kernel_size
    x = features[:, : out_len * kernel_size, :].reshape(B, out_len, kernel_size, C)
    pooled = jnp.max(x, axis=2)  # (B, out_len, C)
    if out_len == 1:
        return pooled.reshape(B, C)
    return jnp.transpose(pooled, (0, 2, 1))


if __name__ == "__main__":
    key = jax.random.PRNGKey(0)

    # Case 1: module's intended use — pool over all points per group (out_len=1).
    B, N, C = 2, 16, 32
    k1 = 16
    x1 = jax.random.normal(key, (B, N, C), dtype=jnp.float32)
    out1 = jax.block_until_ready(grouped_max_pool(x1, k1))
    ref1 = _reference(x1, k1)
    assert out1.shape == ref1.shape, (out1.shape, ref1.shape)
    assert jnp.allclose(out1, ref1), "mismatch vs reference (case 1)"

    # Case 2: out_len > 1, force the tiled (multi-grid-step) path with a small
    # target block so the (bt=1, g=multiple-of-8) tiling is exercised.
    B2, N2, C2 = 2, 128, 128
    k2 = 8
    x2 = jax.random.normal(jax.random.PRNGKey(1), (B2, N2, C2), dtype=jnp.float32)
    out2 = jax.block_until_ready(
        grouped_max_pool(x2, k2, target_block_bytes=8 * 1024))
    ref2 = _reference(x2, k2)
    assert out2.shape == ref2.shape, (out2.shape, ref2.shape)
    assert jnp.allclose(out2, ref2), "mismatch vs reference (case 2)"

    # Case 3: bf16 (max is dtype-exact; halves HBM traffic for the mem-bound kernel).
    x3 = x1.astype(jnp.bfloat16)
    out3 = jax.block_until_ready(grouped_max_pool(x3, k1))
    ref3 = _reference(x3, k1)
    assert out3.dtype == jnp.bfloat16
    assert jnp.array_equal(out3, ref3), "mismatch vs reference (case 3)"

    print("KERNEL_OK")
</pallas_src>

<mosaic_0001>
module attributes {stable_mosaic.version = 11 : i64} {
  func.func @_grouped_maxpool_kernel(%arg0: i32, %arg1: i32, %arg2: memref<2x1x16x32xf32, #tpu.memory_space<vmem>>, %arg3: memref<2x1x32xf32, #tpu.memory_space<vmem>>) attributes {dimension_semantics = [#tpu.dimension_semantics<parallel>, #tpu.dimension_semantics<parallel>], iteration_bounds = array<i64: 1, 1>, scalar_prefetch = 0 : i64, scratch_operands = 0 : i64, tpu.core_type = #tpu.core_type<tc>, window_params = [{transform_indices = @transform_0, window_bounds = array<i64: 2, 1, 16, 32>}, {transform_indices = @transform_1, window_bounds = array<i64: 2, 1, 32>}]} {
    %c0 = arith.constant 0 : index
    %c0_0 = arith.constant 0 : index
    %c0_1 = arith.constant 0 : index
    %c0_2 = arith.constant 0 : index
    %0 = vector.load %arg2[%c0, %c0_0, %c0_1, %c0_2] : memref<2x1x16x32xf32, #tpu.memory_space<vmem>>, vector<2x1x16x32xf32>
    %cst = arith.constant dense<0xFF800000> : vector<2x1x32xf32>
    %1 = vector.multi_reduction <maximumf>, %0, %cst [2] : vector<2x1x16x32xf32> to vector<2x1x32xf32>
    %c0_3 = arith.constant 0 : index
    %c0_4 = arith.constant 0 : index
    %c0_5 = arith.constant 0 : index
    %2 = vector.load %arg3[%c0_3, %c0_4, %c0_5] : memref<2x1x32xf32, #tpu.memory_space<vmem>>, vector<2x1x32xf32>
    tpu.vector_store %arg3[%c0_3, %c0_4, %c0_5], %1 {strides = array<i32>} : memref<2x1x32xf32, #tpu.memory_space<vmem>>, vector<2x1x32xf32>,
    return
  }
  func.func @transform_0(%arg0: i32, %arg1: i32) -> (i32, i32, i32, i32) {
    %c0_i32 = arith.constant 0 : i32
    %c0_i32_0 = arith.constant 0 : i32
    %c0_i32_1 = arith.constant 0 : i32
    return %arg0, %arg1, %c0_i32, %c0_i32_0 : i32, i32, i32, i32
  }
  func.func @transform_1(%arg0: i32, %arg1: i32) -> (i32, i32, i32) {
    %c0_i32 = arith.constant 0 : i32
    %c0_i32_0 = arith.constant 0 : i32
    return %arg0, %arg1, %c0_i32 : i32, i32, i32
  }
}

</mosaic_0001>

<llo_original>
// kernel: tpu_custom_call.1
$region0: #{tpu_custom_call.1}
  #allocation0 [shape = 'u32[]', space=smem, size = 0x4, offset = 0x4, fixed_abs, tag = 'smem constant byte address 0x4 - core index']
  #allocation1 [shape = 'u32[72,128]{1,0:T(1,128)}', space=vmem, size = 0x9000, scoped, tag = 'internal scratch']
  %s0 = inlined_call_operand.hbm [shape: f32[2,1,16,32], index: 0, kind: input, shape index: {}]
  %s1 = inlined_call_operand.hbm [shape: f32[2,1,32], index: 1, kind: output, shape index: {}]
  %s2 = sld [smem:[#allocation0]]
  $region18: #{tpu_custom_call.1} parent=0
    _
  %s4 = ssub.s32 1, %s2
  %s5 = scalar_select 0, %s4, %s2
  $region1: #{tpu_custom_call.1} parent=0
    #allocation2 [shape = 'u8[16384]{0}', space=vmem, size = 0x4000, scoped, tag = 'input window, operand 0, single buffered']
    #allocation3 [shape = 's32[1]{0}', space=sflag, size = 0x4, scoped, tag = 'scoped memory for tpu_custom_call.1']
    #allocation4 [shape = 's32[1]{0}', space=sflag, size = 0x4, scoped, tag = 'scoped memory for tpu_custom_call.1']
    #allocation5 [shape = 'u8[1024]{0}', space=vmem, size = 0x400, scoped, tag = 'output window, operand 0, single buffered']
    %6 = vsyncpa [#allocation3], 0
    %7 = vsyncpa [#allocation4], 0
    // Predicated region
    $region2: #{tpu_custom_call.1} parent=1 // pred_check
      _
    $region3: #{tpu_custom_call.1} parent=1 // pred_check_branch
      %9 = sbr.rel (0) target = $region5
    $region4: #{tpu_custom_call.1} parent=1 // pred_region
      %11 = vsyncadd [#allocation3], 0
      %s12 = sshll.u32 %s0, 4
      %s13 = int_to_ptr.hbm [resolvable:$true] %s12
      %s14 = sshll.u32 [#allocation2], 4
      %s15 = int_to_ptr.vmem [resolvable:$true] %s14
      %20 = dma.hbm_to_vmem [thread:$0]  %s13, 512, %s15, [#allocation3], 128, 128, 8
    $region5: #{tpu_custom_call.1} parent=1 // pred_fallthru
      _
    // Predicated region
    $region6: #{tpu_custom_call.1} parent=1 // pred_check
      _
    $region7: #{tpu_custom_call.1} parent=1 // pred_check_branch
      %22 = sbr.rel (0) target = $region9
    $region8: #{tpu_custom_call.1} parent=1 // pred_region
      %24 = dma.done [#allocation3], 512
    $region9: #{tpu_custom_call.1} parent=1 // pred_fallthru
      _
    %v25 = vld [vmem:[#allocation2] sm:$0xff]
    %v26 = vld [vmem:[#allocation2 + $0x8] sm:$0xff]
    %v27 = vld [vmem:[#allocation2 + $0x10] sm:$0xff]
    %v28 = vld [vmem:[#allocation2 + $0x18] sm:$0xff]
    %vm29 = vcmask 261120
    %v30 = vsel %vm29, %v25, -inf
    %v31 = vsel %vm29, %v26, -inf
    %v32 = vmax.f32 %v30, %v31
    %v33 = vrot.slane %v32, 4
    %v34 = vmax.f32 %v32, %v33
    %v35 = vrot.slane %v34, 2
    %v36 = vmax.f32 %v34, %v35
    %v37 = vrot.slane %v36, 1
    %v38 = vmax.f32 %v36, %v37
    %v39 = vsel %vm29, %v27, -inf
    %v40 = vsel %vm29, %v28, -inf
    %v41 = vmax.f32 %v39, %v40
    %v42 = vrot.slane %v41, 4
    %v43 = vmax.f32 %v41, %v42
    %v44 = vrot.slane %v43, 2
    %v45 = vmax.f32 %v43, %v44
    %v46 = vrot.slane %v45, 1
    %v47 = vmax.f32 %v45, %v46
    %vm48 = vcmask 253952
    %49 = vst.msk [vmem:[#allocation5] sm:$0x1] %vm48, %v38
    %50 = vst.msk [vmem:[#allocation5 + $0x1] sm:$0x1] %vm48, %v47
    // Predicated region
    $region10: #{tpu_custom_call.1} parent=1 // pred_check
      _
    $region11: #{tpu_custom_call.1} parent=1 // pred_check_branch
      %52 = sbr.rel (0) target = $region13
    $region12: #{tpu_custom_call.1} parent=1 // pred_region
      %54 = vsyncadd [#allocation4], 0
      %s55 = sshll.u32 [#allocation5], 4
      %s56 = int_to_ptr.vmem [resolvable:$true] %s55
      %s57 = sshll.u32 %s1, 4
      %s58 = int_to_ptr.hbm [resolvable:$true] %s57
      %63 = dma.vmem_to_hbm [thread:$0]  %s56, 32, %s58, [#allocation4], 16, 16, 1
    $region13: #{tpu_custom_call.1} parent=1 // pred_fallthru
      _
    // Predicated region
    $region14: #{tpu_custom_call.1} parent=1 // pred_check
      _
    $region15: #{tpu_custom_call.1} parent=1 // pred_check_branch
      %65 = sbr.rel (0) target = $region17
    $region16: #{tpu_custom_call.1} parent=1 // pred_region
      %67 = dma.done [#allocation4], 32
    $region17: #{tpu_custom_call.1} parent=1 // pred_fallthru
      _
    %68 = vsyncpa [#allocation3], 1
    %69 = vsyncpa [#allocation4], 1

</llo_original>
